<compile_context>
chip_gen: v5e
topology: v5e:2x2
jax: 0.10.0
libtpu: 0.0.40
codegen_flags: <defaults>
</compile_context>

<pallas_src>
import functools

import numpy as np
import jax
import jax.numpy as jnp
from jax.experimental import pallas as pl
from jax.experimental.pallas import tpu as pltpu


def _make_kernel(N, bt):
    def kernel(x_ref, oh_ref, o_ref):
        # Load in stored dtype, cast in VMEM (handles bf16/f16 inputs too).
        x = x_ref[...].astype(jnp.float32)              # (bt, N*N)
        oh = oh_ref[...]                                 # (N*N, N) bf16 0/1

        # Stack [x ; x*x] along sublanes -> single bf16 MXU pass, f32 accumulate.
        xb = x.astype(jnp.bfloat16)
        x2b = (x * x).astype(jnp.bfloat16)
        stacked = jnp.concatenate([xb, x2b], axis=0)     # (2*bt, N*N)
        s = jnp.dot(stacked, oh, preferred_element_type=jnp.float32)  # (2*bt, N)
        s1 = s[:bt]                                      # per-diagonal sums
        s2 = s[bt:]                                      # per-diagonal sum of squares

        d = jax.lax.broadcasted_iota(jnp.int32, (1, N), 1)   # diagonal offset d
        L = float(N) - d.astype(jnp.float32)                 # diagonal length

        # Unbiased variance via one-pass moments; clamp against cancellation.
        var = (s2 - s1 * s1 / L) / jnp.maximum(L - 1.0, 1.0)
        var = jnp.maximum(var, 0.0)
        scaled_std = jnp.sqrt(var) * (L * 0.05)              # std(diag * L / 20)

        # Only offsets d = 1 .. N-2 contribute (torch loop skips the last diag).
        valid = (d >= 1) & (d <= N - 2)
        partial = jnp.sum(jnp.where(valid, scaled_std, 0.0))  # scalar

        o_ref[...] = jnp.full((1, 1, 128), partial, dtype=jnp.float32)

    return kernel


@functools.lru_cache(maxsize=None)
def _build_loss_reg(B, N):
    nsq = N * N

    # Host-precomputed 0/1 diagonal-projection matrix (constant per N), bf16.
    i = np.arange(N)[:, None]
    j = np.arange(N)[None, :]
    d = (j - i).reshape(-1)                       # matches p = i*N + j (row-major)
    oh_np = np.zeros((nsq, N), dtype=np.float32)
    sel = d >= 1
    oh_np[np.arange(nsq)[sel], d[sel]] = 1.0
    oh = jnp.asarray(oh_np, dtype=jnp.bfloat16)   # 0/1 -> exact in bf16

    # Batch tiling: 8-sublane multiples when possible, else the full batch.
    bt = 8 if B % 8 == 0 else B
    grid_b = B // bt

    # Explicit VMEM budget for the actual buffers (input double-buffered,
    # resident OH, in-kernel temporaries) plus headroom.
    x_block_bytes = bt * nsq * 4
    oh_bytes = nsq * N * 2
    vmem_est = 2 * x_block_bytes + 2 * oh_bytes + 2 * 128 * 4 \
        + 8 * x_block_bytes + (1 << 20)
    vmem_limit = int(min(max(vmem_est, 4 << 20), 100 << 20))

    call = pl.pallas_call(
        _make_kernel(N, bt),
        out_shape=jax.ShapeDtypeStruct((grid_b, 1, 128), jnp.float32),
        grid=(grid_b,),
        in_specs=[
            pl.BlockSpec((bt, nsq), lambda g: (g, 0)),   # batch tile of X
            pl.BlockSpec((nsq, N), lambda g: (0, 0)),    # OH stays resident
        ],
        out_specs=pl.BlockSpec((1, 1, 128), lambda g: (g, 0, 0)),
        compiler_params=pltpu.CompilerParams(
            dimension_semantics=("parallel",),
            vmem_limit_bytes=vmem_limit,
        ),
    )

    inv_denom = 1.0 / (B * (N - 2))

    @jax.jit
    def run(ssmap):
        # Contiguous reshape is a free bitcast; dtype cast happens in-kernel.
        x_flat = ssmap.reshape(B, nsq)
        partials = call(x_flat, oh)                  # (grid_b, 1, 128)
        return jnp.sum(partials[:, 0, 0]) * inv_denom

    return run


def loss_reg(ssmap):
    """Pallas TPU forward of Loss_Reg.  ssmap: (B, N, N)."""
    B, N, M = ssmap.shape
    assert N == M and N >= 3, "SSMap must be square with N >= 3"
    return _build_loss_reg(B, N)(ssmap)


# TODO(synk): forward only — no custom_vjp, so this kernel is not differentiable;
#             training use would need a backward kernel or a pure-JAX fallback.


def _loss_reg_reference(ssmap):
    # Plain-JAX mirror of the PyTorch module (numerical sanity check only).
    B, N, _ = ssmap.shape
    per_batch = []
    for b in range(B):
        x = ssmap[b]
        vals = []
        for dd in range(1, N - 1):
            diag = jnp.diagonal(x, offset=dd)
            L = N - dd
            vals.append(jnp.std(diag * (L / 20.0), ddof=1))
        per_batch.append(jnp.mean(jnp.stack(vals)))
    return jnp.mean(jnp.stack(per_batch))


if __name__ == "__main__":
    key = jax.random.PRNGKey(0)
    B, N = 16, 16                      # small SSMap batch: 16 maps of 16x16
    ssmap = jax.random.normal(key, (B, N, N), dtype=jnp.float32)

    loss = loss_reg(ssmap)
    jax.block_until_ready(loss)

    ref = _loss_reg_reference(ssmap)
    assert loss.shape == () and bool(jnp.isfinite(loss))
    # bf16 MXU operands (exact 0/1 OH, f32 accumulate) -> ~0.3% tolerance.
    assert bool(jnp.allclose(loss, ref, rtol=1e-2, atol=1e-4)), (float(loss), float(ref))
    print("KERNEL_OK")
</pallas_src>

<mosaic_0001>
module attributes {stable_mosaic.version = 11 : i64} {
  func.func @kernel(%arg0: i32, %arg1: memref<8x256xf32, #tpu.memory_space<vmem>>, %arg2: memref<256x16xbf16, #tpu.memory_space<vmem>>, %arg3: memref<1x1x128xf32, #tpu.memory_space<vmem>>) attributes {dimension_semantics = [#tpu.dimension_semantics<parallel>], iteration_bounds = array<i64: 2>, scalar_prefetch = 0 : i64, scratch_operands = 0 : i64, tpu.core_type = #tpu.core_type<tc>, window_params = [{transform_indices = @transform_0, window_bounds = array<i64: 8, 256>}, {pipeline_mode = #tpu.pipeline_mode<synchronous>, transform_indices = @transform_1, window_bounds = array<i64: 256, 16>}, {transform_indices = @transform_2, window_bounds = array<i64: 1, 1, 128>}]} {
    %c0 = arith.constant 0 : index
    %c0_0 = arith.constant 0 : index
    %0 = vector.load %arg1[%c0, %c0_0] : memref<8x256xf32, #tpu.memory_space<vmem>>, vector<8x256xf32>
    %c0_1 = arith.constant 0 : index
    %c0_2 = arith.constant 0 : index
    %1 = vector.load %arg2[%c0_1, %c0_2] : memref<256x16xbf16, #tpu.memory_space<vmem>>, vector<256x16xbf16>
    %2 = arith.truncf %0 : vector<8x256xf32> to vector<8x256xbf16>
    %3 = arith.mulf %0, %0 : vector<8x256xf32>
    %4 = arith.truncf %3 : vector<8x256xf32> to vector<8x256xbf16>
    %5 = tpu.concatenate %2, %4 in 0 : vector<8x256xbf16>, vector<8x256xbf16> -> vector<16x256xbf16>
    %cst = arith.constant dense<0.000000e+00> : vector<16x16xf32>
    %6 = tpu.matmul %5, %1, %cst {dimension_numbers = #tpu.dot_dimension_numbers<[1], [0], [0], [1], [0, 0, 1, 1], [], []>} : vector<16x256xbf16>, vector<256x16xbf16>, vector<16x16xf32> -> vector<16x16xf32>
    %7 = vector.extract_strided_slice %6 {offsets = [0, 0], sizes = [8, 16], strides = [1, 1]} : vector<16x16xf32> to vector<8x16xf32>
    %8 = vector.extract_strided_slice %6 {offsets = [8, 0], sizes = [8, 16], strides = [1, 1]} : vector<16x16xf32> to vector<8x16xf32>
    %9 = tpu.iota {dimensions = array<i32: 1>} : vector<1x16xi32>
    %10 = arith.sitofp %9 : vector<1x16xi32> to vector<1x16xf32>
    %cst_3 = arith.constant 1.600000e+01 : f32
    %11 = vector.broadcast %cst_3 : f32 to vector<1x16xf32>
    %12 = arith.subf %11, %10 : vector<1x16xf32>
    %13 = arith.mulf %7, %7 : vector<8x16xf32>
    %14 = vector.broadcast %12 : vector<1x16xf32> to vector<8x16xf32>
    %15 = arith.divf %13, %14 : vector<8x16xf32>
    %16 = arith.subf %8, %15 : vector<8x16xf32>
    %cst_4 = arith.constant 1.000000e+00 : f32
    %17 = vector.broadcast %cst_4 : f32 to vector<1x16xf32>
    %18 = arith.subf %12, %17 : vector<1x16xf32>
    %cst_5 = arith.constant 1.000000e+00 : f32
    %19 = vector.broadcast %cst_5 : f32 to vector<1x16xf32>
    %20 = arith.maximumf %18, %19 : vector<1x16xf32>
    %21 = vector.broadcast %20 : vector<1x16xf32> to vector<8x16xf32>
    %22 = arith.divf %16, %21 : vector<8x16xf32>
    %cst_6 = arith.constant 0.000000e+00 : f32
    %23 = vector.broadcast %cst_6 : f32 to vector<8x16xf32>
    %24 = arith.maximumf %22, %23 : vector<8x16xf32>
    %25 = math.sqrt %24 : vector<8x16xf32>
    %cst_7 = arith.constant 5.000000e-02 : f32
    %26 = vector.broadcast %cst_7 : f32 to vector<1x16xf32>
    %27 = arith.mulf %12, %26 : vector<1x16xf32>
    %28 = vector.broadcast %27 : vector<1x16xf32> to vector<8x16xf32>
    %29 = arith.mulf %25, %28 : vector<8x16xf32>
    %c1_i32 = arith.constant 1 : i32
    %30 = vector.broadcast %c1_i32 : i32 to vector<1x16xi32>
    %31 = arith.cmpi sge, %9, %30 : vector<1x16xi32>
    %c14_i32 = arith.constant 14 : i32
    %32 = vector.broadcast %c14_i32 : i32 to vector<1x16xi32>
    %33 = arith.cmpi sle, %9, %32 : vector<1x16xi32>
    %34 = arith.andi %31, %33 : vector<1x16xi1>
    %cst_8 = arith.constant 0.000000e+00 : f32
    %35 = vector.shape_cast %34 : vector<1x16xi1> to vector<1x16xi1>
    %36 = vector.broadcast %35 : vector<1x16xi1> to vector<8x16xi1>
    %37 = vector.broadcast %cst_8 : f32 to vector<8x16xf32>
    %38 = arith.select %36, %29, %37 : vector<8x16xi1>, vector<8x16xf32>
    %39 = vector.shape_cast %38 : vector<8x16xf32> to vector<1x8x16xf32>
    %cst_9 = arith.constant dense<0.000000e+00> : vector<1xf32>
    %40 = vector.multi_reduction <add>, %39, %cst_9 [1, 2] : vector<1x8x16xf32> to vector<1xf32>
    %41 = vector.shape_cast %40 : vector<1xf32> to vector<1x1x1xf32>
    %42 = vector.extract %41[0, 0, 0] : f32 from vector<1x1x1xf32>
    %43 = vector.broadcast %42 : f32 to vector<1x1x128xf32>
    %c0_10 = arith.constant 0 : index
    %c0_11 = arith.constant 0 : index
    %c0_12 = arith.constant 0 : index
    %44 = vector.load %arg3[%c0_10, %c0_11, %c0_12] : memref<1x1x128xf32, #tpu.memory_space<vmem>>, vector<1x1x128xf32>
    tpu.vector_store %arg3[%c0_10, %c0_11, %c0_12], %43 {strides = array<i32>} : memref<1x1x128xf32, #tpu.memory_space<vmem>>, vector<1x1x128xf32>,
    return
  }
  func.func @transform_0(%arg0: i32) -> (i32, i32) {
    %c0_i32 = arith.constant 0 : i32
    %c0_i32_0 = arith.constant 0 : i32
    return %arg0, %c0_i32 : i32, i32
  }
  func.func @transform_1(%arg0: i32) -> (i32, i32) {
    %c0_i32 = arith.constant 0 : i32
    %c0_i32_0 = arith.constant 0 : i32
    %c0_i32_1 = arith.constant 0 : i32
    return %c0_i32, %c0_i32_0 : i32, i32
  }
  func.func @transform_2(%arg0: i32) -> (i32, i32, i32) {
    %c0_i32 = arith.constant 0 : i32
    %c0_i32_0 = arith.constant 0 : i32
    %c0_i32_1 = arith.constant 0 : i32
    return %arg0, %c0_i32, %c0_i32_0 : i32, i32, i32
  }
}

</mosaic_0001>

<llo_original>
// kernel: run.1
$region0: #{run.1}
  #allocation0 [shape = 'u32[]', space=smem, size = 0x4, offset = 0x4, fixed_abs, tag = 'smem constant byte address 0x4 - core index']
  #allocation1 [shape = 'u32[72,128]{1,0:T(1,128)}', space=vmem, size = 0x9000, scoped, tag = 'internal scratch']
  %s0 = inlined_call_operand.vmem [shape: f32[16,256], index: 0, kind: input, shape index: {}]
  %s1 = inlined_call_operand.vmem [shape: bf16[256,16], index: 1, kind: input, shape index: {}]
  %s2 = inlined_call_operand.vmem [shape: f32[2,1,128], index: 2, kind: output, shape index: {}]
  %s3 = sld [smem:[#allocation0]]
  $region41: #{run.1} parent=0
    _
  %s5 = ssub.s32 1, %s3
  %s6 = scalar_select 0, %s5, %s3
  loop: start=0, step=1, limit=4
  $region2: #{run.1} parent=0 // loop_pre_header
    _
  $region3: #{run.1} parent=0 // loop_header
    %s8 = sphi 0, %s12
    %p9 = scmp.ge.s32.totalorder %s8, 4
    %s18 = sphi 0, %s20
    %s21 = sphi 0, %s18
    %s22 = sphi 0, %s21
    %s38 = sphi 0, %s22
    %s42 = sphi 0, %s42
    %s44 = sphi 0, %s42
    %s45 = sphi 0, %s44
    %s59 = sphi 0, %s45
    %s65 = sphi 0, %s67
    %s68 = sphi 0, %s65
    %s69 = sphi 0, %s68
    %s85 = sphi 0, %s69
  $region4: #{run.1} parent=0 // loop_header_branch
    %11 = sbr.rel (%p9) target = $region8
  $region5: #{run.1} parent=0 // loop_body
    %s13 = ssub.s32 %s8, 1
    %s14 = ssub.s32 %s8, 2
    %s15 = sadd.s32 %s8, 1
    %s16 = ssub.s32 %s8, %s15
    %p17 = scmp.eq.s32.totalorder %s16, 0
    %s19 = sadd.s32 %s18, 1
    %s20 = scalar_select %p17, %s18, %s19
    %p23 = pneg %p17
    %p24 = scmp.eq.s32.totalorder %s8, 1
    %p25 = por %p23, %p24
    %p26 = scmp.ne.s32.totalorder %s18, %s21
    %p27 = scmp.eq.s32.totalorder %s8, 0
    %p28 = por %p26, %p27
    %p29 = scmp.ne.s32.totalorder %s18, %s21
    %p30 = scmp.eq.s32.totalorder %s13, 1
    %p31 = por %p29, %p30
    %p32 = scmp.ne.s32.totalorder %s21, %s22
    %p33 = scmp.eq.s32.totalorder %s13, 0
    %p34 = por %p32, %p33
    %p35 = scmp.ne.s32.totalorder %s21, %s22
    %p36 = scmp.eq.s32.totalorder %s14, 1
    %p37 = por %p35, %p36
    %p39 = scmp.ne.s32.totalorder %s22, %s38
    %p40 = scmp.eq.s32.totalorder %s14, 0
    %p41 = por %p39, %p40
    %s43 = sadd.s32 %s42, 1
    %p46 = scmp.eq.s32.totalorder %s8, 1
    %p47 = scmp.ne.s32.totalorder %s42, %s44
    %p48 = scmp.eq.s32.totalorder %s8, 0
    %p49 = por %p47, %p48
    %p50 = scmp.ne.s32.totalorder %s42, %s44
    %p51 = scmp.eq.s32.totalorder %s13, 1
    %p52 = por %p50, %p51
    %p53 = scmp.ne.s32.totalorder %s44, %s45
    %p54 = scmp.eq.s32.totalorder %s13, 0
    %p55 = por %p53, %p54
    %p56 = scmp.ne.s32.totalorder %s44, %s45
    %p57 = scmp.eq.s32.totalorder %s14, 1
    %p58 = por %p56, %p57
    %p60 = scmp.ne.s32.totalorder %s45, %s59
    %p61 = scmp.eq.s32.totalorder %s14, 0
    %p62 = por %p60, %p61
    %s63 = ssub.s32 %s8, %s15
    %p64 = scmp.eq.s32.totalorder %s63, 0
    %s66 = sadd.s32 %s65, 1
    %s67 = scalar_select %p64, %s65, %s66
    %p70 = pneg %p64
    %p71 = scmp.eq.s32.totalorder %s8, 1
    %p72 = por %p70, %p71
    %p73 = scmp.ne.s32.totalorder %s65, %s68
    %p74 = scmp.eq.s32.totalorder %s8, 0
    %p75 = por %p73, %p74
    %p76 = scmp.ne.s32.totalorder %s65, %s68
    %p77 = scmp.eq.s32.totalorder %s13, 1
    %p78 = por %p76, %p77
    %p79 = scmp.ne.s32.totalorder %s68, %s69
    %p80 = scmp.eq.s32.totalorder %s13, 0
    %p81 = por %p79, %p80
    %p82 = scmp.ne.s32.totalorder %s68, %s69
    %p83 = scmp.eq.s32.totalorder %s14, 1
    %p84 = por %p82, %p83
    %p86 = scmp.ne.s32.totalorder %s69, %s85
    %p87 = scmp.eq.s32.totalorder %s14, 0
    %p88 = por %p86, %p87
    %p89 = scmp.le.s32.totalorder 1, %s8
    %p90 = scmp.lt.s32.totalorder %s8, 3
    %p91 = pnand %p89, %p90
    %p92 = pneg %p91
    // Predicated region
    $region9: #{run.1} parent=5 // pred_check
      _
    $region10: #{run.1} parent=5 // pred_check_branch
      %94 = sbr.rel (%p91) target = $region12
    $region11: #{run.1} parent=5 // pred_region
      %s95 = ssub.s32 %s8, 1
      // Predicated region
      $region13: #{run.1} parent=11 // pred_check
        %p96 = pneg %p55
      $region14: #{run.1} parent=11 // pred_check_branch
        %98 = sbr.rel (%p96) target = $region16
      $region15: #{run.1} parent=11 // pred_region
        _
      $region16: #{run.1} parent=11 // pred_fallthru
        _
    $region12: #{run.1} parent=5 // pred_fallthru
      _
    %p99 = scmp.lt.s32.totalorder %s8, 2
    // Predicated region
    $region17: #{run.1} parent=5 // pred_check
      %p100 = pneg %p99
    $region18: #{run.1} parent=5 // pred_check_branch
      %102 = sbr.rel (%p100) target = $region20
    $region19: #{run.1} parent=5 // pred_region
      // Predicated region
      $region21: #{run.1} parent=19 // pred_check
        %p103 = pneg %p28
      $region22: #{run.1} parent=19 // pred_check_branch
        %105 = sbr.rel (%p103) target = $region24
      $region23: #{run.1} parent=19 // pred_region
        %p106 = scmp.lt.s32.totalorder %s8, 1
        %s107 = scalar_select %p106, %s8, 1
        %s108 = smul.addr %s107, 2
        %s109 = smul.addr %s108, 8
        %s110 = scalar_lea.vmem %s0, %s109
      $region24: #{run.1} parent=19 // pred_fallthru
        _
    $region20: #{run.1} parent=5 // pred_fallthru
      _
    %p111 = scmp.le.s32.totalorder 1, %s8
    %p112 = scmp.lt.s32.totalorder %s8, 3
    %p113 = pnand %p111, %p112
    %p114 = pneg %p113
    // Predicated region
    $region25: #{run.1} parent=5 // pred_check
      _
    $region26: #{run.1} parent=5 // pred_check_branch
      %116 = sbr.rel (%p113) target = $region28
    $region27: #{run.1} parent=5 // pred_region
      %s117 = ssub.s32 %s8, 1
      %p118 = scmp.lt.s32.totalorder %s13, 1
      %s119 = scalar_select %p118, %s13, 1
      %s120 = smul.addr %s119, 2
      %s121 = smul.addr %s120, 8
      %s122 = scalar_lea.vmem %s0, %s121
      %p123 = pneg %p34
      %p124 = pneg %p31
      %p125 = pneg %p55
      %p126 = pneg %p52
      %p127 = pneg %p81
      %p128 = pneg %p78
      %p129 = scmp.lt.s32.totalorder %s13, 1
      %s130 = scalar_select %p129, %s13, 1
      %s131 = scalar_lea.vmem %s2, %s130
      %p132 = scmp.lt.s32.totalorder %s13, 1
      %s133 = scalar_select %p132, %s13, 1
      %s134 = smul.addr %s133, 2
      %s135 = smul.addr %s134, 8
      %s136 = scalar_lea.vmem %s0, %s135
      %p137 = scmp.lt.s32.totalorder %s13, 1
      %s138 = scalar_select %p137, %s13, 1
      %s139 = scalar_lea.vmem %s2, %s138
      %v140 = vld [vmem:[%s136] sm:$0xff]
      %v141 = vld [vmem:[%s136 + $0x8] sm:$0xff]
      %v142 = vld [vmem:[%s1] sm:$0xf]
      %v143 = vld [vmem:[%s1 + $0x4] sm:$0xf]
      %v144 = vld [vmem:[%s1 + $0x8] sm:$0xf]
      %v145 = vld [vmem:[%s1 + $0xc] sm:$0xf]
      %v146 = vld [vmem:[%s1 + $0x10] sm:$0xf]
      %v147 = vld [vmem:[%s1 + $0x14] sm:$0xf]
      %v148 = vld [vmem:[%s1 + $0x18] sm:$0xf]
      %v149 = vld [vmem:[%s1 + $0x1c] sm:$0xf]
      %v150 = vld [vmem:[%s1 + $0x20] sm:$0xf]
      %v151 = vld [vmem:[%s1 + $0x24] sm:$0xf]
      %v152 = vld [vmem:[%s1 + $0x28] sm:$0xf]
      %v153 = vld [vmem:[%s1 + $0x2c] sm:$0xf]
      %v154 = vld [vmem:[%s1 + $0x30] sm:$0xf]
      %v155 = vld [vmem:[%s1 + $0x34] sm:$0xf]
      %v156 = vld [vmem:[%s1 + $0x38] sm:$0xf]
      %v157 = vld [vmem:[%s1 + $0x3c] sm:$0xf]
      %v158 = vld [vmem:[%s1 + $0x40] sm:$0xf]
      %v159 = vld [vmem:[%s1 + $0x44] sm:$0xf]
      %v160 = vld [vmem:[%s1 + $0x48] sm:$0xf]
      %v161 = vld [vmem:[%s1 + $0x4c] sm:$0xf]
      %v162 = vld [vmem:[%s1 + $0x50] sm:$0xf]
      %v163 = vld [vmem:[%s1 + $0x54] sm:$0xf]
      %v164 = vld [vmem:[%s1 + $0x58] sm:$0xf]
      %v165 = vld [vmem:[%s1 + $0x5c] sm:$0xf]
      %v166 = vld [vmem:[%s1 + $0x60] sm:$0xf]
      %v167 = vld [vmem:[%s1 + $0x64] sm:$0xf]
      %v168 = vld [vmem:[%s1 + $0x68] sm:$0xf]
      %v169 = vld [vmem:[%s1 + $0x6c] sm:$0xf]
      %v170 = vld [vmem:[%s1 + $0x70] sm:$0xf]
      %v171 = vld [vmem:[%s1 + $0x74] sm:$0xf]
      %v172 = vld [vmem:[%s1 + $0x78] sm:$0xf]
      %v173 = vld [vmem:[%s1 + $0x7c] sm:$0xf]
      %v174 = vpack.c.bf16 %v141, %v140
      %v175 = vmul.f32 %v140, %v140
      %v176 = vmul.f32 %v141, %v141
      %v177 = vpack.c.bf16 %v176, %v175
      %v179 = vunpack.c.l.b16 %v174
      %v180 = vunpack.c.h.b16 %v174
      %v181 = vpack.c.b16 %v179, %v179
      %v182 = vpack.c.b16 %v180, %v180
      %v184 = vunpack.c.l.b16 %v177
      %v185 = vunpack.c.h.b16 %v177
      %v186 = vpack.c.b16 %v184, %v184
      %v187 = vpack.c.b16 %v185, %v185
      %vm188 = vcmask 1043456
      %v191 = vsel %vm188, %v181, %v186
      %v195 = vsel %vm188, %v182, %v187
      %v229 = vunpack.c.l.b16 %v142
      %v230 = vunpack.c.l.b16 %v143
      %v231 = vunpack.c.l.b16 %v144
      %v232 = vunpack.c.l.b16 %v145
      %v233 = vunpack.c.l.b16 %v146
      %v234 = vunpack.c.l.b16 %v147
      %v235 = vunpack.c.l.b16 %v148
      %v236 = vunpack.c.l.b16 %v149
      %v237 = vunpack.c.l.b16 %v150
      %v238 = vunpack.c.l.b16 %v151
      %v239 = vunpack.c.l.b16 %v152
      %v240 = vunpack.c.l.b16 %v153
      %v241 = vunpack.c.l.b16 %v154
      %v242 = vunpack.c.l.b16 %v155
      %v243 = vunpack.c.l.b16 %v156
      %v244 = vunpack.c.l.b16 %v157
      %v245 = vunpack.c.l.b16 %v158
      %v246 = vunpack.c.l.b16 %v159
      %v247 = vunpack.c.l.b16 %v160
      %v248 = vunpack.c.l.b16 %v161
      %v249 = vunpack.c.l.b16 %v162
      %v250 = vunpack.c.l.b16 %v163
      %v251 = vunpack.c.l.b16 %v164
      %v252 = vunpack.c.l.b16 %v165
      %v253 = vunpack.c.l.b16 %v166
      %v254 = vunpack.c.l.b16 %v167
      %v255 = vunpack.c.l.b16 %v168
      %v256 = vunpack.c.l.b16 %v169
      %v257 = vunpack.c.l.b16 %v170
      %v258 = vunpack.c.l.b16 %v171
      %v259 = vunpack.c.l.b16 %v172
      %v260 = vunpack.c.l.b16 %v173
      %v261 = vpack.c.b16 %v230, %v229
      %v262 = vpack.c.b16 %v232, %v231
      %v263 = vpack.c.b16 %v234, %v233
      %v264 = vpack.c.b16 %v236, %v235
      %v265 = vpack.c.b16 %v238, %v237
      %v266 = vpack.c.b16 %v240, %v239
      %v267 = vpack.c.b16 %v242, %v241
      %v268 = vpack.c.b16 %v244, %v243
      %v269 = vpack.c.b16 %v246, %v245
      %v270 = vpack.c.b16 %v248, %v247
      %v271 = vpack.c.b16 %v250, %v249
      %v272 = vpack.c.b16 %v252, %v251
      %v273 = vpack.c.b16 %v254, %v253
      %v274 = vpack.c.b16 %v256, %v255
      %v275 = vpack.c.b16 %v258, %v257
      %v276 = vpack.c.b16 %v260, %v259
      %293 = vmatpush.bf16.msra.mxu0 %v268
      %294 = vmatpush.bf16.msra.mxu0 %v267
      %295 = vmatpush.bf16.msra.mxu0 %v266
      %296 = vmatpush.bf16.msra.mxu0 %v265
      %297 = vmatpush.bf16.msra.mxu0 %v264
      %298 = vmatpush.bf16.msra.mxu0 %v263
      %299 = vmatpush.bf16.msra.mxu0 %v262
      %300 = vmatpush.bf16.msra.mxu0 %v261
      %301 = vmatmul.bf16.gmra.mxu0 %v191
      %v302 = vpop.f32.mrf.mxu0
      %v303 = vadd.f32 0.0, %v302
      %v304 = vpop.f32.mrf.mxu0
      %v305 = vadd.f32 0.0, %v304
      %306 = vdwg.mxu0
      %307 = vmatpush.bf16.msra.mxu0 %v276
      %308 = vmatpush.bf16.msra.mxu0 %v275
      %309 = vmatpush.bf16.msra.mxu0 %v274
      %310 = vmatpush.bf16.msra.mxu0 %v273
      %311 = vmatpush.bf16.msra.mxu0 %v272
      %312 = vmatpush.bf16.msra.mxu0 %v271
      %313 = vmatpush.bf16.msra.mxu0 %v270
      %314 = vmatpush.bf16.msra.mxu0 %v269
      %315 = vmatmul.bf16.gmra.mxu0 %v195
      %v316 = vpop.f32.mrf.mxu0
      %v317 = vadd.f32 %v303, %v316
      %v318 = vpop.f32.mrf.mxu0
      %v319 = vadd.f32 %v305, %v318
      %320 = vdwg.mxu0
      %v321 = vlaneseq
      %v322 = vand.u32 %v321, 127
      %v323 = vcvt.s32.f32 %v322
      %v324 = vsub.f32 16.0, %v323
      %v325 = vmul.f32 %v317, %v317
      %v326 = vrcp.pop %v324
      %v327 = vmul.f32 %v324, %v326
      %v328 = vsub.f32 1.0, %v327
      %v329 = vmul.f32 %v326, %v328
      %v330 = vadd.f32 %v326, %v329
      %vm331 = vweird.f32 %v324
      %vm332 = vweird.f32 %v326
      %vm333 = vmor %vm331, %vm332
      %v334 = vsel %vm333, %v326, %v330
      %v335 = vand.u32 2147483647, %v324
      %vm336 = vcmp.eq.f32.partialorder %v335, 8.507059e+37
      %v337 = vand.u32 %v324, 2147483648
      %v338 = vor.u32 1.1754944e-38, %v337
      %v339 = vsel %vm336, %v338, %v334
      %v340 = vmul.f32 %v325, %v339
      %v341 = vsub.f32 %v319, %v340
      %v342 = vsub.f32 %v324, 1.0
      %v343 = vmax.f32 %v342, 1.0
      %v344 = vrcp.pop %v343
      %v345 = vmul.f32 %v343, %v344
      %v346 = vsub.f32 1.0, %v345
      %v347 = vmul.f32 %v344, %v346
      %v348 = vadd.f32 %v344, %v347
      %vm349 = vweird.f32 %v343
      %vm350 = vweird.f32 %v344
      %vm351 = vmor %vm349, %vm350
      %v352 = vsel %vm351, %v344, %v348
      %v353 = vand.u32 2147483647, %v343
      %vm354 = vcmp.eq.f32.partialorder %v353, 8.507059e+37
      %v355 = vand.u32 %v343, 2147483648
      %v356 = vor.u32 1.1754944e-38, %v355
      %v357 = vsel %vm354, %v356, %v352
      %v358 = vmul.f32 %v341, %v357
      %v359 = vmax.f32 %v358, 0.0
      %v360 = vrsqrt.pop %v359
      %v361 = vmul.f32 %v360, %v359
      %v362 = vmul.f32 %v361, %v360
      %v363 = vmul.f32 0.5, %v362
      %v364 = vsub.f32 1.5, %v363
      %v365 = vmul.f32 %v360, %v364
      %v366 = vmul.f32 %v359, %v365
      %vm367 = vcmp.eq.f32.partialorder %v359, inf
      %v368 = vsel %vm367, %v359, %v366
      %vm369 = vcmp.eq.f32.partialorder %v359, 0.0
      %v370 = vand.u32 %v359, 2147483648
      %v371 = vsel %vm369, %v370, %v368
      %v372 = vmul.f32 %v324, 0.05
      %v373 = vmul.f32 %v371, %v372
      %vm374 = vcmp.ge.s32.totalorder %v322, 1
      %vm375 = vcmp.le.s32.totalorder %v322, 14
      %vm376 = vmand %vm374, %vm375
      %v377 = vsel %vm376, 1, 0
      %vm378 = vcmp.eq.s32.totalorder %v377, 1
      %v379 = vsel %vm378, %v373, 0.0
      %vm380 = vcmask 130048
      %v381 = vsel %vm380, %v379, 0.0
      %382 = vadd.xlane.f32.xlu0 %v381
      %v383 = vpop.xlane.xlu0 %382
      %v384 = vrot.slane %v383, 4
      %v385 = vadd.f32 %v383, %v384
      %v386 = vrot.slane %v385, 2
      %v387 = vadd.f32 %v385, %v386
      %v388 = vrot.slane %v387, 1
      %v389 = vadd.f32 %v387, %v388
      %s390 = vtos %v389
      %v391 = vstv %s390
      %392 = vst [vmem:[%s139] sm:$0x1] %v391
      %p393 = scmp.lt.s32.totalorder %s13, 1
      %s394 = scalar_select %p393, %s13, 1
      %s395 = scalar_lea.vmem %s2, %s394
      // Predicated region
      $region29: #{run.1} parent=27 // pred_check
        %p396 = pneg %p78
      $region30: #{run.1} parent=27 // pred_check_branch
        %398 = sbr.rel (%p396) target = $region32
      $region31: #{run.1} parent=27 // pred_region
        _
      $region32: #{run.1} parent=27 // pred_fallthru
        _
    $region28: #{run.1} parent=5 // pred_fallthru
      _
    %p399 = scmp.le.s32.totalorder 2, %s8
    // Predicated region
    $region33: #{run.1} parent=5 // pred_check
      %p400 = pneg %p399
    $region34: #{run.1} parent=5 // pred_check_branch
      %402 = sbr.rel (%p400) target = $region36
    $region35: #{run.1} parent=5 // pred_region
      %s403 = ssub.s32 %s8, 2
      // Predicated region
      $region37: #{run.1} parent=35 // pred_check
        %p404 = pneg %p84
      $region38: #{run.1} parent=35 // pred_check_branch
        %406 = sbr.rel (%p404) target = $region40
      $region39: #{run.1} parent=35 // pred_region
        %p407 = scmp.lt.s32.totalorder %s14, 1
        %s408 = scalar_select %p407, %s14, 1
        %s409 = scalar_lea.vmem %s2, %s408
      $region40: #{run.1} parent=35 // pred_fallthru
        _
    $region36: #{run.1} parent=5 // pred_fallthru
      _
  $region6: #{run.1} parent=0 // loop_footer
    %s12 = sadd.s32 1, %s8
  $region7: #{run.1} parent=0 // loop_footer_branch
    %7 = sbr.rel target = $region3
  $region8: #{run.1} parent=0 // loop_exit
    _

</llo_original>
